<compile_context>
chip_gen: v6e
topology: v6e:2x2x1
jax: 0.10.0
libtpu: 0.0.40
codegen_flags: <defaults>
</compile_context>

<pallas_src>
import functools

import jax
import jax.numpy as jnp
from jax import lax
from jax.experimental import pallas as pl
from jax.experimental.pallas import tpu as pltpu


# ---------------------------------------------------------------------------
# Helpers: tile selection + compiler params
# ---------------------------------------------------------------------------
def _pick_tile(n, cap, multiple):
    """Largest divisor of n that is <= cap and a multiple of `multiple`
    (or the full extent n when no such divisor exists / n <= cap)."""
    cap = max(1, min(cap, n))
    for t in range(cap, 0, -1):
        if n % t == 0 and (t % multiple == 0 or t == n):
            return t
    return n


def _mosaic_params(dim_sem, block_bytes):
    # Double-buffered pipeline + slack; keep the request modest so it fits the
    # 64 MiB physical VMEM on v7x as well as 128 MiB on v5e/v6e.
    vmem = int(min(48 << 20, max(16 << 20, 4 * block_bytes)))
    return pltpu.CompilerParams(dimension_semantics=dim_sem,
                                vmem_limit_bytes=vmem)


# ---------------------------------------------------------------------------
# Kernel 0: row-tiled L2 normalization (f32 math, bf16 output for MXU operands)
# ---------------------------------------------------------------------------
def _normalize_kernel(f_ref, out_ref):
    f = f_ref[...].astype(jnp.float32)
    sumsq = jnp.sum(f * f, axis=1, keepdims=True)
    inv = lax.rsqrt(jnp.maximum(sumsq, 1e-24))   # == 1 / max(||x||, 1e-12)
    out_ref[...] = (f * inv).astype(out_ref.dtype)


def _normalize_features(contrast_feature):
    n, d = contrast_feature.shape
    tm = _pick_tile(n, 512, 8)
    blk_bytes = tm * d * (4 + 2)
    return pl.pallas_call(
        _normalize_kernel,
        out_shape=jax.ShapeDtypeStruct((n, d), jnp.bfloat16),
        grid=(n // tm,),
        in_specs=[pl.BlockSpec((tm, d), lambda i: (i, 0))],
        out_specs=pl.BlockSpec((tm, d), lambda i: (i, 0)),
        compiler_params=_mosaic_params(("parallel",), blk_bytes),
        cost_estimate=pl.CostEstimate(flops=3 * n * d, transcendentals=n,
                                      bytes_accessed=n * d * 6),
    )(contrast_feature)


# ---------------------------------------------------------------------------
# Kernel 1: tiled adc = (F F^T)/T on the MXU + fused `temp` epilogue
# ---------------------------------------------------------------------------
def _adc_temp_kernel(f_lhs_ref, f_rhs_ref, lab_col_ref, lab_row_ref,
                     sid_col_ref, sid_row_ref, adc_ref, temp_ref,
                     *, inv_temp, tm, tn):
    # bf16 x bf16 -> f32 on the MXU; contract D of both operands (no transpose).
    adc = lax.dot_general(
        f_lhs_ref[...], f_rhs_ref[...],
        dimension_numbers=(((1,), (1,)), ((), ())),
        preferred_element_type=jnp.float32) * inv_temp
    adc_ref[...] = adc

    # Fused epilogue: temp = (adc + 2/T) * mask0 * (1 - aug_mask).
    # Masks regenerated from small label / sample-id vectors (VPU slack).
    row_ids = pl.program_id(0) * tm + lax.broadcasted_iota(jnp.int32, (tm, tn), 0)
    col_ids = pl.program_id(1) * tn + lax.broadcasted_iota(jnp.int32, (tm, tn), 1)
    not_diag = row_ids != col_ids
    same_lab = lab_col_ref[...] == lab_row_ref[...]
    aug = sid_col_ref[...] == sid_row_ref[...]          # same original sample
    mask0 = jnp.logical_and(same_lab, not_diag)
    temp_ref[...] = jnp.where(jnp.logical_and(mask0, jnp.logical_not(aug)),
                              adc + 2.0 * inv_temp, 0.0)


def _compute_adc_temp(feat_bf16, lab_col, lab_row, sid_col, sid_row, temperature):
    n, d = feat_bf16.shape
    tm = _pick_tile(n, 256, 8)        # MXU-friendly row tile
    tn = _pick_tile(n, 1024, 128)     # lane-dense output tile (mult of 128 or full N)
    blk_bytes = (tm * d + tn * d) * 2 + 2 * tm * tn * 4 + 2 * (tm + tn) * 4
    kernel = functools.partial(_adc_temp_kernel, inv_temp=1.0 / temperature,
                               tm=tm, tn=tn)
    return pl.pallas_call(
        kernel,
        out_shape=(jax.ShapeDtypeStruct((n, n), jnp.float32),
                   jax.ShapeDtypeStruct((n, n), jnp.float32)),
        grid=(n // tm, n // tn),
        in_specs=[pl.BlockSpec((tm, d), lambda i, j: (i, 0)),
                  pl.BlockSpec((tn, d), lambda i, j: (j, 0)),
                  pl.BlockSpec((tm, 1), lambda i, j: (i, 0)),
                  pl.BlockSpec((1, tn), lambda i, j: (0, j)),
                  pl.BlockSpec((tm, 1), lambda i, j: (i, 0)),
                  pl.BlockSpec((1, tn), lambda i, j: (0, j))],
        out_specs=(pl.BlockSpec((tm, tn), lambda i, j: (i, j)),
                   pl.BlockSpec((tm, tn), lambda i, j: (i, j))),
        compiler_params=_mosaic_params(("parallel", "parallel"), blk_bytes),
        cost_estimate=pl.CostEstimate(flops=2 * n * n * d, transcendentals=0,
                                      bytes_accessed=2 * n * d * 2 + 2 * n * n * 4),
    )(feat_bf16, feat_bf16, lab_col, lab_row, sid_col, sid_row)


# ---------------------------------------------------------------------------
# Kernel 2: row-slab masked log-softmax + masked mean-log-prob -> per-row loss
# (masks regenerated in-kernel; the only N x N HBM stream is adc)
# ---------------------------------------------------------------------------
def _loss_kernel(adc_ref, lab_col_ref, lab_row_ref, sid_col_ref, sid_row_ref,
                 quant_ref, loss_ref, *, inv_temp, scale, tm, n):
    adc = adc_ref[...]                                            # (tm, n) f32
    row_ids = pl.program_id(0) * tm + lax.broadcasted_iota(jnp.int32, (tm, n), 0)
    col_ids = lax.broadcasted_iota(jnp.int32, (tm, n), 1)
    not_diag = row_ids != col_ids
    same_lab = lab_col_ref[...] == lab_row_ref[...]
    aug = sid_col_ref[...] == sid_row_ref[...]
    mask0 = jnp.logical_and(same_lab, not_diag)

    # Rebuild temp and apply the quantile threshold: mask = mask0 * (temp>q | aug).
    temp = jnp.where(jnp.logical_and(mask0, jnp.logical_not(aug)),
                     adc + 2.0 * inv_temp, 0.0)
    keep = jnp.logical_or(temp > quant_ref[...], aug)
    mask = jnp.where(jnp.logical_and(mask0, keep), 1.0, 0.0)

    # Masked log-softmax over the full row (logits_mask == off-diagonal).
    logits = adc - jnp.max(adc, axis=1, keepdims=True)            # logits_max (detach)
    exp_logits = jnp.exp(logits) * not_diag.astype(jnp.float32)
    log_prob = logits - jnp.log(jnp.sum(exp_logits, axis=1, keepdims=True))

    pos_sum = jnp.sum(mask * log_prob, axis=1, keepdims=True)
    cnt = jnp.sum(mask, axis=1, keepdims=True)
    # Guard rows with zero positives (reference would NaN there); clamp is exact
    # whenever at least one positive exists (integer count >= 1).
    mean_log_prob_pos = pos_sum / jnp.maximum(cnt, 1.0)
    loss_ref[...] = -scale * mean_log_prob_pos


def _compute_loss_rows(adc, lab_col, lab_row, sid_col, sid_row, quantiles,
                       temperature, base_temperature):
    n = adc.shape[0]
    # Size row slabs so a double-buffered (tm, n) f32 block stays ~4 MiB —
    # safe under the scoped-VMEM defaults on v5e/v6e and v7x's 64 MiB VMEM.
    cap = max(8, (4 << 20) // (4 * n))
    tm = _pick_tile(n, cap, 8)
    blk_bytes = tm * n * 4 + 2 * n * 4 + 4 * tm * 4
    kernel = functools.partial(_loss_kernel, inv_temp=1.0 / temperature,
                               scale=temperature / base_temperature,
                               tm=tm, n=n)
    return pl.pallas_call(
        kernel,
        out_shape=jax.ShapeDtypeStruct((n, 1), jnp.float32),
        grid=(n // tm,),
        in_specs=[pl.BlockSpec((tm, n), lambda i: (i, 0)),
                  pl.BlockSpec((tm, 1), lambda i: (i, 0)),
                  pl.BlockSpec((1, n), lambda i: (0, 0)),
                  pl.BlockSpec((tm, 1), lambda i: (i, 0)),
                  pl.BlockSpec((1, n), lambda i: (0, 0)),
                  pl.BlockSpec((tm, 1), lambda i: (i, 0))],
        out_specs=pl.BlockSpec((tm, 1), lambda i: (i, 0)),
        compiler_params=_mosaic_params(("parallel",), blk_bytes),
        cost_estimate=pl.CostEstimate(flops=8 * n * n, transcendentals=n * n,
                                      bytes_accessed=n * n * 4 + 6 * n * 4),
    )(adc, lab_col, lab_row, sid_col, sid_row, quantiles)


# ---------------------------------------------------------------------------
# Full SupConLoss forward (contrast_mode='all')
# ---------------------------------------------------------------------------
def supcon_loss(features, labels, thresh=0.0,
                temperature=0.07, base_temperature=0.07):
    if features.ndim < 3:
        raise ValueError("`features` needs to be [bsz, n_views, ...]")
    if features.ndim > 3:
        features = features.reshape(features.shape[0], features.shape[1], -1)
    bsz, n_views, dim = features.shape
    if labels.shape[0] != bsz:
        raise ValueError("Num of labels does not match num of features")
    n = bsz * n_views

    # contrast_feature = torch.cat(torch.unbind(features, 1), 0)  (view-major)
    contrast_feature = jnp.transpose(features, (1, 0, 2)).reshape(n, dim)
    anchor_labels = jnp.tile(labels.astype(jnp.int32), n_views)    # == contrast_labels
    sample_ids = jnp.tile(jnp.arange(bsz, dtype=jnp.int32), n_views)   # i % bsz
    lab_col = anchor_labels.reshape(n, 1)
    lab_row = anchor_labels.reshape(1, n)
    sid_col = sample_ids.reshape(n, 1)
    sid_row = sample_ids.reshape(1, n)

    # --- Pallas: L2 normalize (f32 math -> bf16 MXU operands) ---
    feat_n = _normalize_features(contrast_feature.astype(jnp.float32))

    # --- Pallas: adc = (F F^T)/T and fused `temp` epilogue ---
    adc, temp = _compute_adc_temp(feat_n, lab_col, lab_row, sid_col, sid_row,
                                  temperature)

    # --- per-row quantile thresholding (glue) ---
    # TODO(synk): the full-row sort + data-dependent gather of the class-wise
    # quantile has no clean Mosaic lowering; kept in plain JAX/XLA.
    counts = jnp.sum(labels[None, :] == labels[:, None], axis=1)   # per-sample class count
    counts_row = jnp.tile(counts, n_views)                         # [N]
    k = n_views * (counts_row - 1)                # entries considered per row
    m = jnp.where(k > 0, k, n)                    # torch slice [-0:] == whole row
    sorted_temp = jnp.sort(temp, axis=-1)         # ascending; positives end up last
    pos = (1.0 - thresh) * (m.astype(jnp.float32) - 1.0)   # torch linear-interp index
    lo = jnp.floor(pos).astype(jnp.int32)
    hi = jnp.ceil(pos).astype(jnp.int32)
    frac = pos - lo.astype(jnp.float32)
    start = n - m
    v_lo = jnp.take_along_axis(sorted_temp, (start + lo)[:, None], axis=1)[:, 0]
    v_hi = jnp.take_along_axis(sorted_temp, (start + hi)[:, None], axis=1)[:, 0]
    quantiles = (v_lo + frac * (v_hi - v_lo)).reshape(n, 1)

    # --- Pallas: masked log-softmax + mean-log-prob (only N x N stream is adc) ---
    loss_rows = _compute_loss_rows(adc, lab_col, lab_row, sid_col, sid_row,
                                   quantiles, temperature, base_temperature)   # [N, 1]
    # loss.view(anchor_count, batch_size).mean() == mean over all N rows
    return jnp.mean(loss_rows)


# ---------------------------------------------------------------------------
# Pure-JAX f32 reference (for numerical sanity checking only)
# ---------------------------------------------------------------------------
def _supcon_loss_ref(features, labels, thresh, temperature, base_temperature):
    bsz, n_views, dim = features.shape
    n = bsz * n_views
    f = features.astype(jnp.float32)
    norm = jnp.sqrt(jnp.sum(f * f, axis=-1, keepdims=True))
    f = f / jnp.maximum(norm, 1e-12)
    cf = jnp.transpose(f, (1, 0, 2)).reshape(n, dim)
    al = jnp.tile(labels, n_views)
    adc = (cf @ cf.T) / temperature
    logits = adc - jnp.max(adc, axis=1, keepdims=True)
    eq = (al[:, None] == al[None, :]).astype(jnp.float32)
    lmask = 1.0 - jnp.eye(n, dtype=jnp.float32)
    mask0 = eq * lmask
    aug = jnp.tile(jnp.eye(bsz, dtype=jnp.float32), (n_views, n_views))
    temp = (adc + 2.0 / temperature) * mask0 * (1.0 - aug)
    counts = jnp.sum(labels[None, :] == labels[:, None], axis=1)
    counts_row = jnp.tile(counts, n_views)
    k = n_views * (counts_row - 1)
    m = jnp.where(k > 0, k, n)
    st = jnp.sort(temp, axis=-1)
    pos = (1.0 - thresh) * (m.astype(jnp.float32) - 1.0)
    lo = jnp.floor(pos).astype(jnp.int32)
    hi = jnp.ceil(pos).astype(jnp.int32)
    frac = pos - lo.astype(jnp.float32)
    start = n - m
    v_lo = jnp.take_along_axis(st, (start + lo)[:, None], axis=1)[:, 0]
    v_hi = jnp.take_along_axis(st, (start + hi)[:, None], axis=1)[:, 0]
    quant = v_lo + frac * (v_hi - v_lo)
    keep = jnp.logical_or(temp > quant[:, None], aug > 0).astype(jnp.float32)
    mask = mask0 * keep
    exp_logits = jnp.exp(logits) * lmask
    log_prob = logits - jnp.log(jnp.sum(exp_logits, axis=1, keepdims=True))
    mlpp = jnp.sum(mask * log_prob, axis=1) / jnp.sum(mask, axis=1)
    return jnp.mean(-(temperature / base_temperature) * mlpp)


if __name__ == "__main__":
    key = jax.random.PRNGKey(0)
    bsz, n_views, dim = 8, 2, 32
    features = jax.random.normal(key, (bsz, n_views, dim), dtype=jnp.float32)
    labels = jnp.array([0, 0, 1, 1, 2, 2, 3, 3], dtype=jnp.int32)

    loss = jax.block_until_ready(
        supcon_loss(features, labels, thresh=0.0,
                    temperature=0.07, base_temperature=0.07))
    assert jnp.isfinite(loss), f"non-finite loss: {loss}"

    # Sanity-check the bf16-MXU pipeline against a pure-JAX f32 reference.
    ref = _supcon_loss_ref(features, labels, 0.0, 0.07, 0.07)
    assert jnp.allclose(loss, ref, rtol=3e-2, atol=3e-2), (float(loss), float(ref))

    # Non-trivial threshold path (quantile thresholding active).
    loss_t = jax.block_until_ready(supcon_loss(features, labels, thresh=0.5))
    assert jnp.isfinite(loss_t), f"non-finite loss: {loss_t}"
    ref_t = _supcon_loss_ref(features, labels, 0.5, 0.07, 0.07)
    assert jnp.allclose(loss_t, ref_t, rtol=3e-2, atol=3e-2), (float(loss_t), float(ref_t))

    print("KERNEL_OK")
</pallas_src>

<mosaic_0001>
module attributes {stable_mosaic.version = 11 : i64} {
  func.func @_normalize_kernel(%arg0: i32, %arg1: memref<16x32xf32, #tpu.memory_space<vmem>>, %arg2: memref<16x32xbf16, #tpu.memory_space<vmem>>) attributes {dimension_semantics = [#tpu.dimension_semantics<parallel>], iteration_bounds = array<i64: 1>, scalar_prefetch = 0 : i64, scratch_operands = 0 : i64, tpu.core_type = #tpu.core_type<tc>, window_params = [{transform_indices = @transform_0, window_bounds = array<i64: 16, 32>}, {transform_indices = @transform_1, window_bounds = array<i64: 16, 32>}]} {
    %c0 = arith.constant 0 : index
    %c0_0 = arith.constant 0 : index
    %0 = vector.load %arg1[%c0, %c0_0] : memref<16x32xf32, #tpu.memory_space<vmem>>, vector<16x32xf32>
    %1 = arith.mulf %0, %0 : vector<16x32xf32>
    %cst = arith.constant dense<0.000000e+00> : vector<16xf32>
    %2 = vector.multi_reduction <add>, %1, %cst [1] : vector<16x32xf32> to vector<16xf32>
    %3 = vector.shape_cast %2 : vector<16xf32> to vector<16x1xf32>
    %cst_1 = arith.constant 1.000000e-24 : f32
    %4 = vector.broadcast %cst_1 : f32 to vector<16x1xf32>
    %5 = arith.maximumf %3, %4 : vector<16x1xf32>
    %6 = math.rsqrt %5 : vector<16x1xf32>
    %7 = vector.broadcast %6 : vector<16x1xf32> to vector<16x32xf32>
    %8 = arith.mulf %0, %7 : vector<16x32xf32>
    %9 = arith.truncf %8 : vector<16x32xf32> to vector<16x32xbf16>
    %c0_2 = arith.constant 0 : index
    %c0_3 = arith.constant 0 : index
    %10 = vector.load %arg2[%c0_2, %c0_3] : memref<16x32xbf16, #tpu.memory_space<vmem>>, vector<16x32xbf16>
    tpu.vector_store %arg2[%c0_2, %c0_3], %9 {strides = array<i32>} : memref<16x32xbf16, #tpu.memory_space<vmem>>, vector<16x32xbf16>,
    return
  }
  func.func @transform_0(%arg0: i32) -> (i32, i32) {
    %c0_i32 = arith.constant 0 : i32
    %c0_i32_0 = arith.constant 0 : i32
    return %arg0, %c0_i32 : i32, i32
  }
  func.func @transform_1(%arg0: i32) -> (i32, i32) {
    %c0_i32 = arith.constant 0 : i32
    %c0_i32_0 = arith.constant 0 : i32
    return %arg0, %c0_i32 : i32, i32
  }
}

</mosaic_0001>

<llo_original>
// kernel: tpu_custom_call.1
$region0: #{tpu_custom_call.1}
  #allocation0 [shape = 'u32[]', space=smem, size = 0x4, offset = 0x4, fixed_abs, tag = 'smem constant byte address 0x4 - core index']
  #allocation1 [shape = 'u32[144,128]{1,0:T(1,128)}', space=vmem, size = 0x12000, scoped, tag = 'internal scratch']
  %s0 = inlined_call_operand.hbm [shape: f32[16,32], index: 0, kind: input, shape index: {}]
  %s1 = inlined_call_operand.hbm [shape: bf16[16,32], index: 1, kind: output, shape index: {}]
  %s2 = sld [smem:[#allocation0]]
  $region18: #{tpu_custom_call.1} parent=0
    _
  %s4 = ssub.s32 1, %s2
  %s5 = scalar_select 0, %s4, %s2
  $region1: #{tpu_custom_call.1} parent=0
    #allocation2 [shape = 'u8[8192]{0}', space=vmem, size = 0x2000, scoped, tag = 'input window, operand 0, single buffered']
    #allocation3 [shape = 's32[1]{0}', space=sflag, size = 0x4, scoped, tag = 'scoped memory for tpu_custom_call.1']
    #allocation4 [shape = 's32[1]{0}', space=sflag, size = 0x4, scoped, tag = 'scoped memory for tpu_custom_call.1']
    #allocation5 [shape = 'u8[4096]{0}', space=vmem, size = 0x1000, scoped, tag = 'output window, operand 0, single buffered']
    %6 = vsyncpa [#allocation3], 0
    %7 = vsyncpa [#allocation4], 0
    // Predicated region
    $region2: #{tpu_custom_call.1} parent=1 // pred_check
      _
    $region3: #{tpu_custom_call.1} parent=1 // pred_check_branch
      %9 = sbr.rel (0) target = $region5
    $region4: #{tpu_custom_call.1} parent=1 // pred_region
      %s11 = ssub.s32 256, 256
      %12 = vsyncadd [#allocation3], %s11
      %s13 = sshll.u32 [#allocation2], 4
      %s14 = int_to_ptr.vmem [resolvable:$true] %s13
      %19 = dma.hbm_to_vmem [thread:$0]  %s0, 256, %s14, [#allocation3], 128, 128, 8
    $region5: #{tpu_custom_call.1} parent=1 // pred_fallthru
      _
    // Predicated region
    $region6: #{tpu_custom_call.1} parent=1 // pred_check
      _
    $region7: #{tpu_custom_call.1} parent=1 // pred_check_branch
      %21 = sbr.rel (0) target = $region9
    $region8: #{tpu_custom_call.1} parent=1 // pred_region
      %22 = dma.done [#allocation3], 256
    $region9: #{tpu_custom_call.1} parent=1 // pred_fallthru
      _
    %v23 = vld [vmem:[#allocation2] sm:$0xff]
    %v24 = vld [vmem:[#allocation2 + $0x8] sm:$0xff]
    %v25 = vmul.f32 %v23, %v23
    %v26 = vmul.f32 %v24, %v24
    %vm27 = vcmask 261120
    %v28 = vsel %vm27, %v25, 0.0
    %29 = vadd.xlane.f32.xlu0 %v28
    %v30 = vpop.xlane.xlu0 %29
    %v31 = vsel %vm27, %v26, 0.0
    %32 = vadd.xlane.f32.xlu0 %v31
    %v33 = vpop.xlane.xlu0 %32
    %v34 = vmax.f32 %v30, 1e-24
    %v35 = vmax.f32 %v33, 1e-24
    %v36 = vrsqrt.pop %v34
    %v37 = vrsqrt.pop %v35
    %v38 = vmul.f32 %v23, %v36
    %v39 = vmul.f32 %v24, %v37
    %v40 = vpack.c.bf16 %v39, %v38
    %v42 = vunpack.c.l.b16 %v40
    %v43 = vunpack.c.h.b16 %v40
    %v44 = vpack.c.b16 %v42, %v42
    %v45 = vpack.c.b16 %v43, %v43
    %vm48 = vcmask 257024
    %49 = vst.msk [vmem:[#allocation5] sm:$0xf] %vm48, %v44
    %50 = vst.msk [vmem:[#allocation5 + $0x4] sm:$0xf] %vm48, %v45
    // Predicated region
    $region10: #{tpu_custom_call.1} parent=1 // pred_check
      _
    $region11: #{tpu_custom_call.1} parent=1 // pred_check_branch
      %52 = sbr.rel (0) target = $region13
    $region12: #{tpu_custom_call.1} parent=1 // pred_region
      %s54 = ssub.s32 128, 128
      %55 = vsyncadd [#allocation4], %s54
      %s56 = sshll.u32 [#allocation5], 4
      %s57 = int_to_ptr.vmem [resolvable:$true] %s56
      %62 = dma.vmem_to_hbm [thread:$0]  %s57, 128, %s1, [#allocation4], 64, 64, 4
    $region13: #{tpu_custom_call.1} parent=1 // pred_fallthru
      _
    // Predicated region
    $region14: #{tpu_custom_call.1} parent=1 // pred_check
      _
    $region15: #{tpu_custom_call.1} parent=1 // pred_check_branch
      %64 = sbr.rel (0) target = $region17
    $region16: #{tpu_custom_call.1} parent=1 // pred_region
      %65 = dma.done [#allocation4], 128
    $region17: #{tpu_custom_call.1} parent=1 // pred_fallthru
      _
    %66 = vsyncpa [#allocation3], 1
    %67 = vsyncpa [#allocation4], 1

</llo_original>
